<compile_context>
chip_gen: v7x
topology: tpu7x:2x2x1
jax: 0.10.0
libtpu: 0.0.40
codegen_flags: <defaults>
</compile_context>

<pallas_src>
import math
import functools

import jax
import jax.numpy as jnp
from jax import lax
from jax.experimental import pallas as pl
from jax.experimental.pallas import tpu as pltpu


_LANE = 512            # lane-dense last dim (multiple of 128)
_MAX_TILE_ROWS = 512   # rows per tile: 512*512*4B = 1 MiB per f32 tile buffer


def make_pe(d_model: int, max_len: int = 10, dtype=jnp.float32):
    """Sinusoidal positional-encoding buffer (same math as the module __init__)."""
    position = jnp.arange(max_len, dtype=jnp.float32)[:, None]
    div_term = jnp.exp(
        jnp.arange(0, d_model, 2, dtype=jnp.float32) * (-math.log(10000.0) / d_model)
    )
    pe = jnp.zeros((max_len, 1, d_model), dtype=jnp.float32)
    pe = pe.at[:, 0, 0::2].set(jnp.sin(position * div_term))
    pe = pe.at[:, 0, 1::2].set(jnp.cos(position * div_term))
    return pe.astype(dtype)


def _add_kernel(x_ref, pe_ref, o_ref):
    # Pure lane-dense elementwise add (eval / p == 0 path).
    o_ref[...] = (x_ref[...] + pe_ref[...]).astype(o_ref.dtype)


def _hash_u32(h):
    # splitmix32-style finalizer (uint32 arithmetic, wraps mod 2**32).
    h = h ^ (h >> 16)
    h = h * jnp.uint32(0x7FEB352D)
    h = h ^ (h >> 15)
    h = h * jnp.uint32(0x846CA68B)
    h = h ^ (h >> 16)
    return h


def _add_dropout_kernel(seed_ref, x_ref, pe_ref, o_ref, *,
                        thresh31: int, scale: float, tile_rows: int, lane: int):
    y = (x_ref[...] + pe_ref[...]).astype(jnp.float32)

    # Counter-based per-element PRNG: the global linear index already mixes
    # pl.program_id, so different tiles never reuse the same random bits.
    # TODO(synk): bit stream differs from torch.nn.Dropout; the semantics
    # (drop prob p, scale 1/(1-p)) match.
    row = lax.broadcasted_iota(jnp.int32, (tile_rows, lane), 0)
    col = lax.broadcasted_iota(jnp.int32, (tile_rows, lane), 1)
    base_row = pl.program_id(0) * tile_rows
    gidx = (base_row + row) * lane + col
    gidx = lax.convert_element_type(gidx, jnp.uint32)
    seed_u = lax.convert_element_type(seed_ref[0], jnp.uint32)
    h = _hash_u32(gidx ^ (seed_u * jnp.uint32(0x9E3779B9)))

    # Compare on 31 bits as signed ints (avoids relying on unsigned compares).
    r31 = lax.convert_element_type(h & jnp.uint32(0x7FFFFFFF), jnp.int32)
    keep = (r31 >= jnp.int32(thresh31)).astype(jnp.float32)   # P(keep) = 1 - p
    # Multiply-by-mask with the scale folded in (no zeros materialization).
    o_ref[...] = (y * (keep * jnp.float32(scale))).astype(o_ref.dtype)


def _round_up(n: int, m: int) -> int:
    return ((n + m - 1) // m) * m


def positional_encoding_forward(x, pe, *, p: float = 0.1, training: bool = False,
                                seed: int = 0):
    """x: [seq_len, batch, d_model]; pe: [max_len, 1, d_model] (max_len >= seq_len)."""
    S, B, D = x.shape
    dtype = x.dtype
    use_dropout = training and p > 0.0
    if use_dropout and p >= 1.0:
        # torch.nn.Dropout(p=1.0) zeroes everything (avoids uint threshold overflow).
        return jnp.zeros_like(x)

    # Plain-JAX glue: slice pe like pe[:x.size(0)], broadcast over batch, and
    # flatten x / pe to a lane-dense 2-D slab the kernel can tile.
    pe_b = jnp.broadcast_to(pe[:S].astype(dtype), (S, B, D))
    n = S * B * D
    lane = _LANE
    rows = _round_up(pl.cdiv(n, lane), 8)          # sublane-align the row count
    tile_rows = min(_MAX_TILE_ROWS, rows)
    rows = _round_up(rows, tile_rows)              # whole number of tiles
    n_pad = rows * lane

    def to_2d(a):
        a = a.reshape(-1)
        if n_pad != n:
            a = jnp.pad(a, (0, n_pad - n))
        return a.reshape(rows, lane)

    x2, pe2 = to_2d(x), to_2d(pe_b)
    grid = (rows // tile_rows,)
    blk = (tile_rows, lane)
    out_shape = jax.ShapeDtypeStruct((rows, lane), dtype)
    cparams = pltpu.CompilerParams(dimension_semantics=("parallel",))

    if not use_dropout:
        out2 = pl.pallas_call(
            _add_kernel,
            out_shape=out_shape,
            grid_spec=pl.GridSpec(
                grid=grid,
                in_specs=[pl.BlockSpec(blk, lambda i: (i, 0)),
                          pl.BlockSpec(blk, lambda i: (i, 0))],
                out_specs=pl.BlockSpec(blk, lambda i: (i, 0)),
            ),
            compiler_params=cparams,
            input_output_aliases={0: 0},           # output aliases the x slab
        )(x2, pe2)
    else:
        thresh31 = min(int(p * 2147483648.0), 2147483647)   # saturating threshold
        kernel = functools.partial(
            _add_dropout_kernel,
            thresh31=thresh31, scale=1.0 / (1.0 - p),
            tile_rows=tile_rows, lane=lane,
        )
        seed_arr = jnp.array([seed], dtype=jnp.int32)
        out2 = pl.pallas_call(
            kernel,
            out_shape=out_shape,
            grid_spec=pltpu.PrefetchScalarGridSpec(
                num_scalar_prefetch=1,             # seed lands in SMEM
                grid=grid,
                in_specs=[pl.BlockSpec(blk, lambda i, s: (i, 0)),
                          pl.BlockSpec(blk, lambda i, s: (i, 0))],
                out_specs=pl.BlockSpec(blk, lambda i, s: (i, 0)),
            ),
            compiler_params=cparams,
            input_output_aliases={1: 0},           # arg 0 is the seed; x slab is arg 1
        )(seed_arr, x2, pe2)

    return out2.reshape(-1)[:n].reshape(S, B, D)


if __name__ == "__main__":
    SEQ, BATCH, D_MODEL, MAX_LEN = 8, 2, 32, 10
    P = 0.1

    key = jax.random.PRNGKey(0)
    x = jax.random.normal(key, (SEQ, BATCH, D_MODEL), dtype=jnp.float32)
    pe = make_pe(D_MODEL, max_len=MAX_LEN, dtype=jnp.float32)
    ref = x + pe[:SEQ]

    # Eval mode (dropout is identity): must match the reference exactly.
    out_eval = jax.block_until_ready(
        positional_encoding_forward(x, pe, p=P, training=False))
    assert out_eval.shape == (SEQ, BATCH, D_MODEL)
    assert jnp.allclose(out_eval, ref, atol=1e-6), "eval-mode mismatch vs reference"

    # Train mode (in-kernel dropout): every element is either dropped (0) or
    # kept and scaled by 1/(1-p).
    out_train = jax.block_until_ready(
        positional_encoding_forward(x, pe, p=P, training=True, seed=1234))
    assert out_train.shape == (SEQ, BATCH, D_MODEL)
    kept = out_train != 0.0
    assert jnp.allclose(jnp.where(kept, out_train * (1.0 - P), 0.0),
                        jnp.where(kept, ref, 0.0), atol=1e-5), \
        "train-mode kept values are not ref/(1-p)"
    keep_frac = float(jnp.mean(kept.astype(jnp.float32)))
    assert 0.7 <= keep_frac <= 1.0, f"implausible keep fraction {keep_frac}"

    print("KERNEL_OK")
</pallas_src>

<mosaic_0001>
module attributes {stable_mosaic.version = 11 : i64} {
  func.func @_add_kernel(%arg0: i32, %arg1: memref<8x512xf32, #tpu.memory_space<vmem>>, %arg2: memref<8x512xf32, #tpu.memory_space<vmem>>, %arg3: memref<8x512xf32, #tpu.memory_space<vmem>>) attributes {dimension_semantics = [#tpu.dimension_semantics<parallel>], iteration_bounds = array<i64: 1>, scalar_prefetch = 0 : i64, scratch_operands = 0 : i64, tpu.core_type = #tpu.core_type<tc>, window_params = [{transform_indices = @transform_0, window_bounds = array<i64: 8, 512>}, {transform_indices = @transform_1, window_bounds = array<i64: 8, 512>}, {transform_indices = @transform_2, window_bounds = array<i64: 8, 512>}]} {
    %c0 = arith.constant 0 : index
    %c0_0 = arith.constant 0 : index
    %0 = vector.load %arg1[%c0, %c0_0] : memref<8x512xf32, #tpu.memory_space<vmem>>, vector<8x512xf32>
    %c0_1 = arith.constant 0 : index
    %c0_2 = arith.constant 0 : index
    %1 = vector.load %arg2[%c0_1, %c0_2] : memref<8x512xf32, #tpu.memory_space<vmem>>, vector<8x512xf32>
    %2 = arith.addf %0, %1 : vector<8x512xf32>
    %c0_3 = arith.constant 0 : index
    %c0_4 = arith.constant 0 : index
    %3 = vector.load %arg3[%c0_3, %c0_4] : memref<8x512xf32, #tpu.memory_space<vmem>>, vector<8x512xf32>
    tpu.vector_store %arg3[%c0_3, %c0_4], %2 {strides = array<i32>} : memref<8x512xf32, #tpu.memory_space<vmem>>, vector<8x512xf32>,
    return
  }
  func.func @transform_0(%arg0: i32) -> (i32, i32) {
    %c0_i32 = arith.constant 0 : i32
    %c0_i32_0 = arith.constant 0 : i32
    return %arg0, %c0_i32 : i32, i32
  }
  func.func @transform_1(%arg0: i32) -> (i32, i32) {
    %c0_i32 = arith.constant 0 : i32
    %c0_i32_0 = arith.constant 0 : i32
    return %arg0, %c0_i32 : i32, i32
  }
  func.func @transform_2(%arg0: i32) -> (i32, i32) {
    %c0_i32 = arith.constant 0 : i32
    %c0_i32_0 = arith.constant 0 : i32
    return %arg0, %c0_i32 : i32, i32
  }
}

</mosaic_0001>

<llo_original>
// kernel: tpu_custom_call.1
$region0: #{tpu_custom_call.1}
  #allocation0 [shape = 'u32[]', space=smem, size = 0x4, offset = 0x4, fixed_abs, tag = 'smem constant byte address 0x4 - core index']
  #allocation1 [shape = 'u32[144,128]{1,0:T(1,128)}', space=vmem, size = 0x12000, scoped, tag = 'internal scratch']
  %s0 = inlined_call_operand.hbm [shape: f32[8,512], index: 0, kind: input, shape index: {}, may-alias: {0,2}]
  %s1 = inlined_call_operand.vmem [shape: f32[8,512], index: 1, kind: input, shape index: {}]
  %s2 = inlined_call_operand.hbm [shape: f32[8,512], index: 2, kind: output, shape index: {}, may-alias: {0,2}]
  %s3 = sld [smem:[#allocation0]]
  $region22: #{tpu_custom_call.1} parent=0
    _
  %s5 = ssub.s32 1, %s3
  %s6 = scalar_select 0, %s5, %s3
  $region1: #{tpu_custom_call.1} parent=0
    #allocation2 [shape = 'u8[16384]{0}', space=vmem, size = 0x4000, scoped, tag = 'input window, operand 0, single buffered']
    #allocation3 [shape = 's32[1]{0}', space=sflag, size = 0x4, scoped, tag = 'scoped memory for tpu_custom_call.1']
    #allocation4 [shape = 's32[1]{0}', space=sflag, size = 0x4, scoped, tag = 'scoped memory for tpu_custom_call.1']
    #allocation5 [shape = 'u8[16384]{0}', space=vmem, size = 0x4000, scoped, tag = 'output window, operand 0, single buffered']
    %7 = vsyncpa [#allocation3], 0
    %8 = vsyncpa [#allocation4], 0
    // Predicated region
    $region2: #{tpu_custom_call.1} parent=1 // pred_check
      _
    $region3: #{tpu_custom_call.1} parent=1 // pred_check_branch
      %10 = sbr.rel (0) target = $region5
    $region4: #{tpu_custom_call.1} parent=1 // pred_region
      %s12 = ssub.s32 512, 512
      %13 = vsyncadd [#allocation3], %s12
      %s15 = sshll.u32 [#allocation2], 4
      %s16 = int_to_ptr.vmem [resolvable:$true] %s15
      %18 = dma.hbm_to_vmem [thread:$0]  %s0, 512, %s16, [#allocation3]
    $region5: #{tpu_custom_call.1} parent=1 // pred_fallthru
      _
    // Predicated region
    $region6: #{tpu_custom_call.1} parent=1 // pred_check
      _
    $region7: #{tpu_custom_call.1} parent=1 // pred_check_branch
      %20 = sbr.rel (0) target = $region9
    $region8: #{tpu_custom_call.1} parent=1 // pred_region
      _
    $region9: #{tpu_custom_call.1} parent=1 // pred_fallthru
      _
    // Predicated region
    $region10: #{tpu_custom_call.1} parent=1 // pred_check
      _
    $region11: #{tpu_custom_call.1} parent=1 // pred_check_branch
      %22 = sbr.rel (0) target = $region13
    $region12: #{tpu_custom_call.1} parent=1 // pred_region
      %23 = dma.done [#allocation3], 512
    $region13: #{tpu_custom_call.1} parent=1 // pred_fallthru
      _
    %v24 = vld [vmem:[#allocation2] sm:$0xff]
    %v25 = vld [vmem:[#allocation2 + $0x8] sm:$0xff]
    %v26 = vld [vmem:[#allocation2 + $0x10] sm:$0xff]
    %v27 = vld [vmem:[#allocation2 + $0x18] sm:$0xff]
    %v28 = vld [vmem:[%s1] sm:$0xff]
    %v29 = vld [vmem:[%s1 + $0x8] sm:$0xff]
    %v30 = vld [vmem:[%s1 + $0x10] sm:$0xff]
    %v31 = vld [vmem:[%s1 + $0x18] sm:$0xff]
    %v32 = vadd.f32 %v24, %v28
    %v33 = vadd.f32 %v25, %v29
    %v34 = vadd.f32 %v26, %v30
    %v35 = vadd.f32 %v27, %v31
    %36 = vst [vmem:[#allocation5] sm:$0xff] %v32
    %37 = vst [vmem:[#allocation5 + $0x8] sm:$0xff] %v33
    %38 = vst [vmem:[#allocation5 + $0x10] sm:$0xff] %v34
    %39 = vst [vmem:[#allocation5 + $0x18] sm:$0xff] %v35
    // Predicated region
    $region14: #{tpu_custom_call.1} parent=1 // pred_check
      _
    $region15: #{tpu_custom_call.1} parent=1 // pred_check_branch
      %41 = sbr.rel (0) target = $region17
    $region16: #{tpu_custom_call.1} parent=1 // pred_region
      %s43 = ssub.s32 512, 512
      %44 = vsyncadd [#allocation4], %s43
      %s46 = sshll.u32 [#allocation5], 4
      %s47 = int_to_ptr.vmem [resolvable:$true] %s46
      %49 = dma.vmem_to_hbm [thread:$0]  %s47, 512, %s2, [#allocation4]
    $region17: #{tpu_custom_call.1} parent=1 // pred_fallthru
      _
    // Predicated region
    $region18: #{tpu_custom_call.1} parent=1 // pred_check
      _
    $region19: #{tpu_custom_call.1} parent=1 // pred_check_branch
      %51 = sbr.rel (0) target = $region21
    $region20: #{tpu_custom_call.1} parent=1 // pred_region
      %52 = dma.done [#allocation4], 512
    $region21: #{tpu_custom_call.1} parent=1 // pred_fallthru
      _
    %53 = vsyncpa [#allocation3], 1
    %54 = vsyncpa [#allocation4], 1

</llo_original>
